<compile_context>
chip_gen: v7x
topology: tpu7x:2x2x1
jax: 0.10.0
libtpu: 0.0.40
codegen_flags: <defaults>
</compile_context>

<pallas_src>
import jax
import jax.numpy as jnp
from jax.experimental import pallas as pl
from jax.experimental.pallas import tpu as pltpu


def make_positional_table(max_len: int, num_hiddens: int, dtype=jnp.float32) -> jnp.ndarray:
    """Reproduces the PyTorch __init__ construction of self.P, shape (1, max_len, H).

    The table is computed in float32 and cast once to `dtype` here (hoisted out of the
    per-call wrapper). Using a reduced dtype (e.g. bf16) is a deliberate numerics choice.
    """
    assert num_hiddens % 2 == 0, "num_hiddens must be even (same limitation as the PyTorch reference)"
    pos = jnp.arange(max_len, dtype=jnp.float32).reshape(-1, 1)
    inv = jnp.power(
        10000.0, jnp.arange(0, num_hiddens, 2, dtype=jnp.float32) / num_hiddens
    )
    X = pos / inv  # (max_len, H//2)
    P = jnp.zeros((1, max_len, num_hiddens), dtype=jnp.float32)
    P = P.at[:, :, 0::2].set(jnp.sin(X))
    P = P.at[:, :, 1::2].set(jnp.cos(X))
    return P.astype(dtype)


def _add_pe_kernel(x_ref, p_ref, o_ref):
    # x_ref/o_ref: (row_tile, lane_tile); p_ref: (p_rows, lane_tile) with p_rows equal
    # to row_tile (folded case) or 1 (broadcast case). Pure VPU add, HBM-stream bound.
    o_ref[...] = x_ref[...] + p_ref[...]


def _divisors(n: int):
    return [d for d in range(1, n + 1) if n % d == 0]


def _round_down(x: int, m: int) -> int:
    return (x // m) * m


def _choose_fold(B: int, S: int, H: int, sub: int) -> int:
    """Smallest divisor G of S (multiple of the sublane count) to fold into rows when B
    is small, keeping the folded lane dim >= 128. Returns 1 when no fold is needed/possible."""
    if B >= sub:
        return 1
    for g in sorted(_divisors(S)):
        if g == 1 or g % sub != 0:
            continue
        if (S // g) * H < 128:
            continue
        return g
    return 1


def abs_positional_encoding(x: jnp.ndarray, P: jnp.ndarray) -> jnp.ndarray:
    """x: (B, S, H); P: (1, max_len, H). Returns x + P[:, :S, :] (dropout p=0.0 is identity)."""
    B, S, H = x.shape
    if P.dtype != x.dtype:
        # Fallback only; prefer building the table in the activation dtype at init.
        P = P.astype(x.dtype)
    itemsize = jnp.dtype(x.dtype).itemsize
    sub = 8 if itemsize >= 4 else (16 if itemsize == 2 else 32)

    # ---- layout: fold sequence into rows when batch is small ----
    G = _choose_fold(B, S, H, sub)
    Lf = (S // G) * H          # folded lane extent
    R = B * G                  # folded row extent

    x2 = x.reshape(R, Lf)                      # free reshape (contiguous)
    p2 = P[0, :S, :].reshape(G, Lf)            # (G, Lf); G==1 -> single broadcast row

    # ---- block sizing by byte budget (~4 MiB of x per block) ----
    BLOCK_BUDGET = 4 << 20
    budget_elems = max(1, BLOCK_BUDGET // itemsize)

    if G > 1:
        row_divs = sorted(d for d in _divisors(G) if d % sub == 0)  # G itself qualifies
        row_min = row_divs[0]
    else:
        row_divs = []
        row_min = R if R < sub else sub

    lane_cap = max(128, _round_down(budget_elems // row_min, 128))
    lane_tile = Lf if Lf <= lane_cap else lane_cap

    rows_fit = max(row_min, budget_elems // max(lane_tile, 1))
    if G > 1:
        row_tile = max(d for d in row_divs if d <= rows_fit)
    elif rows_fit >= R or R < sub:
        row_tile = R
    else:
        row_tile = max(sub, _round_down(rows_fit, sub))

    # ---- guarantee >=4 grid steps for pipelining / megacore on larger problems ----
    total_bytes = R * Lf * itemsize
    if total_bytes > (2 << 20):
        for _ in range(64):
            if pl.cdiv(Lf, lane_tile) * pl.cdiv(R, row_tile) >= 4:
                break
            if lane_tile > 128:
                lane_tile = max(128, _round_down(lane_tile // 2, 128))
                continue
            if G > 1:
                smaller = [d for d in row_divs if d < row_tile]
                if smaller:
                    row_tile = max(smaller)
                    continue
            elif row_tile > sub:
                row_tile = max(sub, _round_down(row_tile // 2, sub))
                continue
            break

    n_lane = pl.cdiv(Lf, lane_tile)
    n_pb = max(G // row_tile, 1)               # P-row blocks per batch period
    n_b = pl.cdiv(R, row_tile * n_pb)          # batch-period blocks (innermost axis)
    p_rows = row_tile if G > 1 else 1

    # x/out block index along rows: b * n_pb + pb; P block ignores b -> stays resident.
    x_spec = pl.BlockSpec((row_tile, lane_tile), lambda l, pb, b: (b * n_pb + pb, l))
    p_spec = pl.BlockSpec((p_rows, lane_tile), lambda l, pb, b: (pb, l))

    out2 = pl.pallas_call(
        _add_pe_kernel,
        out_shape=jax.ShapeDtypeStruct((R, Lf), x.dtype),
        grid_spec=pltpu.PrefetchScalarGridSpec(
            num_scalar_prefetch=0,
            grid=(n_lane, n_pb, n_b),
            in_specs=[x_spec, p_spec],
            out_specs=pl.BlockSpec((row_tile, lane_tile), lambda l, pb, b: (b * n_pb + pb, l)),
        ),
        compiler_params=pltpu.CompilerParams(
            # No reductions: every axis is independent (2-TC sharding on v7x).
            dimension_semantics=("parallel", "parallel", "parallel"),
            # Double-buffered x/out/P blocks (<= 6 x 4 MiB) fit with headroom on all gens.
            vmem_limit_bytes=48 << 20,
        ),
    )(x2, p2)

    return out2.reshape(B, S, H)


if __name__ == "__main__":
    # Module config (deterministic "parameters": the sinusoidal table P)
    num_hiddens = 32
    max_len = 1000
    # TODO(synk): dropout with p>0.0 (RNG masking) is not implemented; p=0.0 -> identity.
    P = make_positional_table(max_len, num_hiddens, dtype=jnp.float32)

    # Small deterministic input consistent with forward: (batch, seq, hidden)
    B, S, H = 2, 8, num_hiddens
    key = jax.random.PRNGKey(0)
    x = jax.random.normal(key, (B, S, H), dtype=jnp.float32)

    out = abs_positional_encoding(x, P)
    out = jax.block_until_ready(out)

    # Reference check in plain JAX (dropout p=0.0 -> identity)
    ref = x + P[:, :S, :]
    assert out.shape == (B, S, H)
    assert jnp.allclose(out, ref, atol=1e-6), "mismatch vs reference"

    print("KERNEL_OK")
</pallas_src>

<mosaic_0001>
module attributes {stable_mosaic.version = 11 : i64} {
  func.func @_add_pe_kernel(%arg0: i32, %arg1: i32, %arg2: i32, %arg3: memref<2x256xf32, #tpu.memory_space<vmem>>, %arg4: memref<1x256xf32, #tpu.memory_space<vmem>>, %arg5: memref<2x256xf32, #tpu.memory_space<vmem>>) attributes {dimension_semantics = [#tpu.dimension_semantics<parallel>, #tpu.dimension_semantics<parallel>, #tpu.dimension_semantics<parallel>], iteration_bounds = array<i64: 1, 1, 1>, scalar_prefetch = 0 : i64, scratch_operands = 0 : i64, tpu.core_type = #tpu.core_type<tc>, window_params = [{transform_indices = @transform_0, window_bounds = array<i64: 2, 256>}, {transform_indices = @transform_1, window_bounds = array<i64: 1, 256>}, {transform_indices = @transform_2, window_bounds = array<i64: 2, 256>}]} {
    %c0 = arith.constant 0 : index
    %c0_0 = arith.constant 0 : index
    %0 = vector.load %arg3[%c0, %c0_0] : memref<2x256xf32, #tpu.memory_space<vmem>>, vector<2x256xf32>
    %c0_1 = arith.constant 0 : index
    %c0_2 = arith.constant 0 : index
    %1 = vector.load %arg4[%c0_1, %c0_2] : memref<1x256xf32, #tpu.memory_space<vmem>>, vector<1x256xf32>
    %2 = vector.broadcast %1 : vector<1x256xf32> to vector<2x256xf32>
    %3 = arith.addf %0, %2 : vector<2x256xf32>
    %c0_3 = arith.constant 0 : index
    %c0_4 = arith.constant 0 : index
    %4 = vector.load %arg5[%c0_3, %c0_4] : memref<2x256xf32, #tpu.memory_space<vmem>>, vector<2x256xf32>
    tpu.vector_store %arg5[%c0_3, %c0_4], %3 {strides = array<i32>} : memref<2x256xf32, #tpu.memory_space<vmem>>, vector<2x256xf32>,
    return
  }
  func.func @transform_0(%arg0: i32, %arg1: i32, %arg2: i32) -> (i32, i32) {
    %c1_i32 = arith.constant 1 : i32
    %0 = arith.muli %arg2, %c1_i32 : i32
    %1 = arith.addi %0, %arg1 : i32
    %c0_i32 = arith.constant 0 : i32
    return %1, %arg0 : i32, i32
  }
  func.func @transform_1(%arg0: i32, %arg1: i32, %arg2: i32) -> (i32, i32) {
    %c0_i32 = arith.constant 0 : i32
    return %arg1, %arg0 : i32, i32
  }
  func.func @transform_2(%arg0: i32, %arg1: i32, %arg2: i32) -> (i32, i32) {
    %c1_i32 = arith.constant 1 : i32
    %0 = arith.muli %arg2, %c1_i32 : i32
    %1 = arith.addi %0, %arg1 : i32
    %c0_i32 = arith.constant 0 : i32
    return %1, %arg0 : i32, i32
  }
}

</mosaic_0001>

<llo_original>
// kernel: tpu_custom_call.1
$region0: #{tpu_custom_call.1}
  #allocation0 [shape = 'u32[]', space=smem, size = 0x4, offset = 0x4, fixed_abs, tag = 'smem constant byte address 0x4 - core index']
  #allocation1 [shape = 'u32[144,128]{1,0:T(1,128)}', space=vmem, size = 0x12000, scoped, tag = 'internal scratch']
  %s0 = inlined_call_operand.hbm [shape: f32[2,256], index: 0, kind: input, shape index: {}]
  %s1 = inlined_call_operand.vmem [shape: f32[1,256], index: 1, kind: input, shape index: {}]
  %s2 = inlined_call_operand.hbm [shape: f32[2,256], index: 2, kind: output, shape index: {}]
  %s3 = sld [smem:[#allocation0]]
  $region22: #{tpu_custom_call.1} parent=0
    _
  %s5 = ssub.s32 1, %s3
  %s6 = scalar_select 0, %s5, %s3
  $region1: #{tpu_custom_call.1} parent=0
    #allocation2 [shape = 'u8[2048]{0}', space=vmem, size = 0x800, scoped, tag = 'input window, operand 0, single buffered']
    #allocation3 [shape = 's32[1]{0}', space=sflag, size = 0x4, scoped, tag = 'scoped memory for tpu_custom_call.1']
    #allocation4 [shape = 's32[1]{0}', space=sflag, size = 0x4, scoped, tag = 'scoped memory for tpu_custom_call.1']
    #allocation5 [shape = 'u8[2048]{0}', space=vmem, size = 0x800, scoped, tag = 'output window, operand 0, single buffered']
    %7 = vsyncpa [#allocation3], 0
    %8 = vsyncpa [#allocation4], 0
    // Predicated region
    $region2: #{tpu_custom_call.1} parent=1 // pred_check
      _
    $region3: #{tpu_custom_call.1} parent=1 // pred_check_branch
      %10 = sbr.rel (0) target = $region5
    $region4: #{tpu_custom_call.1} parent=1 // pred_region
      %s11 = sadd.s32 0, 0
      %s13 = ssub.s32 64, 64
      %14 = vsyncadd [#allocation3], %s13
      %s15 = smul.addr %s11, 2
      %s16 = smul.addr %s15, 32
      %s17 = scalar_lea.hbm %s0, %s16
      %s19 = sshll.u32 [#allocation2], 4
      %s20 = int_to_ptr.vmem [resolvable:$true] %s19
      %22 = dma.hbm_to_vmem [thread:$0]  %s17, 64, %s20, [#allocation3]
    $region5: #{tpu_custom_call.1} parent=1 // pred_fallthru
      _
    // Predicated region
    $region6: #{tpu_custom_call.1} parent=1 // pred_check
      _
    $region7: #{tpu_custom_call.1} parent=1 // pred_check_branch
      %24 = sbr.rel (0) target = $region9
    $region8: #{tpu_custom_call.1} parent=1 // pred_region
      _
    $region9: #{tpu_custom_call.1} parent=1 // pred_fallthru
      _
    // Predicated region
    $region10: #{tpu_custom_call.1} parent=1 // pred_check
      _
    $region11: #{tpu_custom_call.1} parent=1 // pred_check_branch
      %26 = sbr.rel (0) target = $region13
    $region12: #{tpu_custom_call.1} parent=1 // pred_region
      %27 = dma.done [#allocation3], 64
    $region13: #{tpu_custom_call.1} parent=1 // pred_fallthru
      _
    %s28 = sadd.s32 0, 0
    %s29 = sadd.s32 0, 0
    %v30 = vld [vmem:[#allocation2] sm:$0xf]
    %v31 = vld [vmem:[%s1] sm:$0x3]
    %v33 = vlaneseq
    %v34 = vshrl.u32 %v33, 7
    %v35 = vsub.s32 0, %v34
    %v36 = vrot.slane %v31, %v35
    %v37 = vlaneseq
    %v38 = vshrl.u32 %v37, 7
    %v39 = vsub.s32 1, %v38
    %v40 = vrot.slane %v31, %v39
    %v41 = vcombine.low %v36, %v40
    %v43 = vunpack.c.l.s4 1983009808
    %v44 = vunpack.c.0.s8 %v43
    %v45 = vlaneseq
    %v46 = vshrl.u32 %v45, 7
    %v47 = vsub.s32 %v44, %v46
    %v48 = vrot.slane %v41, %v47
    %v50 = vadd.f32 %v30, %v48
    %51 = vst [vmem:[#allocation5] sm:$0xf] %v50
    // Predicated region
    $region14: #{tpu_custom_call.1} parent=1 // pred_check
      _
    $region15: #{tpu_custom_call.1} parent=1 // pred_check_branch
      %53 = sbr.rel (0) target = $region17
    $region16: #{tpu_custom_call.1} parent=1 // pred_region
      %s54 = sadd.s32 0, 0
      %s56 = ssub.s32 64, 64
      %57 = vsyncadd [#allocation4], %s56
      %s58 = smul.addr %s54, 2
      %s59 = smul.addr %s58, 32
      %s60 = scalar_lea.hbm %s2, %s59
      %s62 = sshll.u32 [#allocation5], 4
      %s63 = int_to_ptr.vmem [resolvable:$true] %s62
      %65 = dma.vmem_to_hbm [thread:$0]  %s63, 64, %s60, [#allocation4]
    $region17: #{tpu_custom_call.1} parent=1 // pred_fallthru
      _
    // Predicated region
    $region18: #{tpu_custom_call.1} parent=1 // pred_check
      _
    $region19: #{tpu_custom_call.1} parent=1 // pred_check_branch
      %67 = sbr.rel (0) target = $region21
    $region20: #{tpu_custom_call.1} parent=1 // pred_region
      %68 = dma.done [#allocation4], 64
    $region21: #{tpu_custom_call.1} parent=1 // pred_fallthru
      _
    %69 = vsyncpa [#allocation3], 1
    %70 = vsyncpa [#allocation4], 1

</llo_original>
